<compile_context>
chip_gen: v7x
topology: tpu7x:2x2x1
jax: 0.10.0
libtpu: 0.0.40
codegen_flags: <defaults>
</compile_context>

<pallas_src>
import functools

import jax
import jax.numpy as jnp
from jax import lax
from jax.experimental import pallas as pl
from jax.experimental.pallas import tpu as pltpu


def rnn_seq_kernel(zx_ref, h0_ref, wh_ref, out_ref, h_scr, *,
                   hidden_size, output_size, steps_per_block):
    """One grid step == a block of `steps_per_block` RNN timesteps.

    zx_ref : (TB, B, NPAD)  precomputed x_t @ Wx + bias for this block of steps
    h0_ref : (B, H)         initial hidden (read only at block 0)
    wh_ref : (H, NPAD)      fused, lane-padded [W_i2h.T | W_i2o.T | 0] hidden rows
    out_ref: (TB, B, NPAD)  per-step slab [new_hidden | log_probs | pad]
    h_scr  : (B, H) VMEM    hidden-state carry across grid blocks
    """
    blk = pl.program_id(0)

    @pl.when(blk == 0)
    def _():
        h_scr[...] = h0_ref[...].astype(jnp.float32)

    batch = zx_ref.shape[1]
    n_pad = wh_ref.shape[1]

    # Hoisted lane mask: logit lanes live in [H, H+O); everything else (hidden
    # lanes and zero-padded lanes) must never touch the softmax max/sum.
    lane = lax.broadcasted_iota(jnp.int32, (batch, n_pad), 1)
    is_logit = (lane >= hidden_size) & (lane < hidden_size + output_size)
    neg_inf = jnp.float32(-jnp.inf)

    w_h = wh_ref[...]            # resident weight, loaded once per block
    h_prev = h_scr[...]          # (B, H) f32 carry

    # Fully-unrolled timestep loop with static indices (TB is small & static).
    for t in range(steps_per_block):
        # combined @ W == (x @ Wx + b) + h @ Wh ; the x part was hoisted out.
        z = zx_ref[t] + jnp.dot(h_prev, w_h, preferred_element_type=jnp.float32)

        # Log-softmax over logit lanes only.
        masked = jnp.where(is_logit, z, neg_inf)
        m = jnp.max(masked, axis=1, keepdims=True)
        shifted = masked - m
        lse = jnp.log(jnp.sum(jnp.exp(shifted), axis=1, keepdims=True))

        # One lane-dense (B, 128) store: [new_hidden | log_probs | pad(z=0)].
        out_ref[t] = jnp.where(is_logit, shifted - lse, z).astype(out_ref.dtype)

        h_prev = z[:, :hidden_size]

    h_scr[...] = h_prev


def rnn_forward(x_seq, h0, w_i2h, b_i2h, w_i2o, b_i2o, *, steps_per_block=8):
    """Run the RNN cell over a whole sequence.

    x_seq : (T, B, input_size)
    h0    : (B, hidden_size)
    Weights in PyTorch layout: w_i2h (H, I+H), b_i2h (H,), w_i2o (O, I+H), b_i2o (O,).
    Returns (log_probs (T, B, O), final_hidden (B, H)) — identical math to
    calling the torch module's forward T times.
    """
    T, B, I = x_seq.shape
    H = w_i2h.shape[0]
    O = w_i2o.shape[0]
    N = H + O
    NPAD = 128 * pl.cdiv(N, 128)          # lane-dense fused width
    f32 = jnp.float32

    x_seq = x_seq.astype(f32)
    h0 = h0.astype(f32)

    # Fuse i2h / i2o column-wise, pad the fused N dim to NPAD with zeros, and
    # split combined-input rows into input-part / hidden-part (no lane concat).
    w_cat = jnp.concatenate([w_i2h.T, w_i2o.T], axis=1).astype(f32)   # (I+H, N)
    w_cat = jnp.pad(w_cat, ((0, 0), (0, NPAD - N)))                   # (I+H, NPAD)
    b_cat = jnp.pad(jnp.concatenate([b_i2h, b_i2o]).astype(f32), (0, NPAD - N))
    w_x = w_cat[:I]                                                   # (I, NPAD)
    w_h = w_cat[I:]                                                   # (H, NPAD)

    # Hoist the input projection (+ bias) out of the serial recurrence: one
    # large parallel GEMM over all timesteps, done outside the kernel.
    zx = (x_seq.reshape(T * B, I) @ w_x + b_cat[None, :]).reshape(T, B, NPAD)

    # Block timesteps per grid iteration; pad T to a multiple of the block.
    TB = max(1, min(steps_per_block, T))
    T_pad = TB * pl.cdiv(T, TB)
    if T_pad != T:
        zx = jnp.pad(zx, ((0, T_pad - T), (0, 0), (0, 0)))

    kernel = functools.partial(rnn_seq_kernel, hidden_size=H, output_size=O,
                               steps_per_block=TB)

    slab = pl.pallas_call(
        kernel,
        out_shape=jax.ShapeDtypeStruct((T_pad, B, NPAD), f32),
        grid=(T_pad // TB,),
        in_specs=[
            pl.BlockSpec((TB, B, NPAD), lambda i: (i, 0, 0)),   # zx, streamed
            pl.BlockSpec((B, H), lambda i: (0, 0)),             # h0, resident
            pl.BlockSpec((H, NPAD), lambda i: (0, 0)),          # w_h, resident
        ],
        out_specs=pl.BlockSpec((TB, B, NPAD), lambda i: (i, 0, 0)),
        scratch_shapes=[pltpu.VMEM((B, H), f32)],                # hidden carry
        compiler_params=pltpu.CompilerParams(
            dimension_semantics=("arbitrary",)),                 # sequential time
    )(zx, h0, w_h)

    log_probs = slab[:T, :, H:H + O]       # (T, B, O)
    final_hidden = slab[T - 1, :, :H]      # (B, H)  (padded steps come after T-1)
    return log_probs, final_hidden


def rnn_cell(x, h, w_i2h, b_i2h, w_i2o, b_i2o):
    """Single-step forward with the exact signature/semantics of the torch
    module: (input, hidden) -> (log_softmax_output, new_hidden)."""
    out, hid = rnn_forward(x[None], h, w_i2h, b_i2h, w_i2o, b_i2o,
                           steps_per_block=1)
    return out[0], hid


def _reference_forward(x_seq, h0, w_i2h, b_i2h, w_i2o, b_i2o):
    """Plain-JAX reference: the torch forward applied T times."""
    h = h0
    outs = []
    for t in range(x_seq.shape[0]):
        combined = jnp.concatenate([x_seq[t], h], axis=1)
        h = combined @ w_i2h.T + b_i2h
        logits = combined @ w_i2o.T + b_i2o
        outs.append(jax.nn.log_softmax(logits, axis=1))
    return jnp.stack(outs), h


if __name__ == "__main__":
    # Small shapes consistent with the module's forward.
    T = 8             # sequence length
    batch = 8         # fills the 8 sublanes of a vreg
    input_size = 16
    hidden_size = 32
    output_size = 8

    key = jax.random.PRNGKey(0)
    kx, kh, kw1, kb1, kw2, kb2 = jax.random.split(key, 6)

    x_seq = jax.random.normal(kx, (T, batch, input_size), dtype=jnp.float32)
    h0 = jax.random.normal(kh, (batch, hidden_size), dtype=jnp.float32)

    combined_size = input_size + hidden_size
    # PyTorch-layout parameters (out_features, in_features) and (out_features,).
    w_i2h = jax.random.normal(kw1, (hidden_size, combined_size), dtype=jnp.float32) * 0.1
    b_i2h = jax.random.normal(kb1, (hidden_size,), dtype=jnp.float32) * 0.1
    w_i2o = jax.random.normal(kw2, (output_size, combined_size), dtype=jnp.float32) * 0.1
    b_i2o = jax.random.normal(kb2, (output_size,), dtype=jnp.float32) * 0.1

    # Full-sequence kernel.
    log_probs, h_final = rnn_forward(x_seq, h0, w_i2h, b_i2h, w_i2o, b_i2o)
    jax.block_until_ready((log_probs, h_final))

    # Reference (torch forward applied per step in plain JAX).
    ref_lp, ref_h = _reference_forward(x_seq, h0, w_i2h, b_i2h, w_i2o, b_i2o)
    assert jnp.allclose(log_probs, ref_lp, atol=1e-4, rtol=1e-4), "log_probs mismatch"
    assert jnp.allclose(h_final, ref_h, atol=1e-4, rtol=1e-4), "final hidden mismatch"

    # Single-step path matches the module's forward exactly as well.
    out1, hid1 = rnn_cell(x_seq[0], h0, w_i2h, b_i2h, w_i2o, b_i2o)
    jax.block_until_ready((out1, hid1))
    combined = jnp.concatenate([x_seq[0], h0], axis=1)
    ref_hid1 = combined @ w_i2h.T + b_i2h
    ref_out1 = jax.nn.log_softmax(combined @ w_i2o.T + b_i2o, axis=1)
    assert jnp.allclose(out1, ref_out1, atol=1e-4, rtol=1e-4), "cell output mismatch"
    assert jnp.allclose(hid1, ref_hid1, atol=1e-4, rtol=1e-4), "cell hidden mismatch"

    print("KERNEL_OK")
</pallas_src>

<mosaic_0001>
module attributes {stable_mosaic.version = 11 : i64} {
  func.func @rnn_seq_kernel(%arg0: i32, %arg1: memref<8x8x128xf32, #tpu.memory_space<vmem>>, %arg2: memref<8x32xf32, #tpu.memory_space<vmem>>, %arg3: memref<32x128xf32, #tpu.memory_space<vmem>>, %arg4: memref<8x8x128xf32, #tpu.memory_space<vmem>>, %arg5: memref<8x32xf32, #tpu.memory_space<vmem>>) attributes {dimension_semantics = [#tpu.dimension_semantics<arbitrary>], iteration_bounds = array<i64: 1>, scalar_prefetch = 0 : i64, scratch_operands = 1 : i64, tpu.core_type = #tpu.core_type<tc>, window_params = [{transform_indices = @transform_0, window_bounds = array<i64: 8, 8, 128>}, {pipeline_mode = #tpu.pipeline_mode<synchronous>, transform_indices = @transform_1, window_bounds = array<i64: 8, 32>}, {pipeline_mode = #tpu.pipeline_mode<synchronous>, transform_indices = @transform_2, window_bounds = array<i64: 32, 128>}, {transform_indices = @transform_3, window_bounds = array<i64: 8, 8, 128>}]} {
    %c0_i32 = arith.constant 0 : i32
    %0 = arith.cmpi eq, %arg0, %c0_i32 : i32
    %1 = arith.extui %0 : i1 to i32
    %c0_i32_0 = arith.constant 0 : i32
    %2 = arith.cmpi ne, %1, %c0_i32_0 : i32
    scf.if %2 {
      %c0_78 = arith.constant 0 : index
      %c0_79 = arith.constant 0 : index
      %180 = vector.load %arg2[%c0_78, %c0_79] : memref<8x32xf32, #tpu.memory_space<vmem>>, vector<8x32xf32>
      %c0_80 = arith.constant 0 : index
      %c0_81 = arith.constant 0 : index
      %181 = vector.load %arg5[%c0_80, %c0_81] : memref<8x32xf32, #tpu.memory_space<vmem>>, vector<8x32xf32>
      tpu.vector_store %arg5[%c0_80, %c0_81], %180 {strides = array<i32>} : memref<8x32xf32, #tpu.memory_space<vmem>>, vector<8x32xf32>,
    } else {
    }
    %3 = tpu.iota {dimensions = array<i32: 1>} : vector<8x128xi32>
    %c32_i32 = arith.constant 32 : i32
    %4 = vector.broadcast %c32_i32 : i32 to vector<8x128xi32>
    %5 = arith.cmpi sge, %3, %4 : vector<8x128xi32>
    %c40_i32 = arith.constant 40 : i32
    %6 = vector.broadcast %c40_i32 : i32 to vector<8x128xi32>
    %7 = arith.cmpi slt, %3, %6 : vector<8x128xi32>
    %8 = arith.andi %5, %7 : vector<8x128xi1>
    %c0 = arith.constant 0 : index
    %c0_1 = arith.constant 0 : index
    %9 = vector.load %arg3[%c0, %c0_1] : memref<32x128xf32, #tpu.memory_space<vmem>>, vector<32x128xf32>
    %c0_2 = arith.constant 0 : index
    %c0_3 = arith.constant 0 : index
    %10 = vector.load %arg5[%c0_2, %c0_3] : memref<8x32xf32, #tpu.memory_space<vmem>>, vector<8x32xf32>
    %c0_4 = arith.constant 0 : index
    %c0_5 = arith.constant 0 : index
    %c0_6 = arith.constant 0 : index
    %11 = vector.load %arg1[%c0_4, %c0_5, %c0_6] : memref<8x8x128xf32, #tpu.memory_space<vmem>>, vector<1x8x128xf32>
    %12 = vector.shape_cast %11 : vector<1x8x128xf32> to vector<8x128xf32>
    %cst = arith.constant dense<0.000000e+00> : vector<8x128xf32>
    %13 = tpu.matmul %10, %9, %cst {dimension_numbers = #tpu.dot_dimension_numbers<[1], [0], [0], [1], [0, 0, 1, 1], [], []>} : vector<8x32xf32>, vector<32x128xf32>, vector<8x128xf32> -> vector<8x128xf32>
    %14 = arith.addf %12, %13 : vector<8x128xf32>
    %cst_7 = arith.constant 0xFF800000 : f32
    %15 = vector.broadcast %cst_7 : f32 to vector<8x128xf32>
    %16 = arith.select %8, %14, %15 : vector<8x128xi1>, vector<8x128xf32>
    %cst_8 = arith.constant dense<0xFF800000> : vector<8xf32>
    %17 = vector.multi_reduction <maximumf>, %16, %cst_8 [1] : vector<8x128xf32> to vector<8xf32>
    %18 = vector.shape_cast %17 : vector<8xf32> to vector<8x1xf32>
    %19 = vector.broadcast %18 : vector<8x1xf32> to vector<8x128xf32>
    %20 = arith.subf %16, %19 : vector<8x128xf32>
    %21 = math.exp %20 : vector<8x128xf32>
    %cst_9 = arith.constant dense<0.000000e+00> : vector<8xf32>
    %22 = vector.multi_reduction <add>, %21, %cst_9 [1] : vector<8x128xf32> to vector<8xf32>
    %23 = vector.shape_cast %22 : vector<8xf32> to vector<8x1xf32>
    %24 = math.log %23 : vector<8x1xf32>
    %25 = vector.broadcast %24 : vector<8x1xf32> to vector<8x128xf32>
    %26 = arith.subf %20, %25 : vector<8x128xf32>
    %27 = arith.select %8, %26, %14 : vector<8x128xi1>, vector<8x128xf32>
    %c0_10 = arith.constant 0 : index
    %c0_11 = arith.constant 0 : index
    %c0_12 = arith.constant 0 : index
    %28 = vector.load %arg4[%c0_10, %c0_11, %c0_12] : memref<8x8x128xf32, #tpu.memory_space<vmem>>, vector<1x8x128xf32>
    %29 = vector.shape_cast %28 : vector<1x8x128xf32> to vector<8x128xf32>
    %30 = vector.shape_cast %27 : vector<8x128xf32> to vector<1x8x128xf32>
    tpu.vector_store %arg4[%c0_10, %c0_11, %c0_12], %30 {strides = array<i32>} : memref<8x8x128xf32, #tpu.memory_space<vmem>>, vector<1x8x128xf32>,
    %31 = vector.extract_strided_slice %14 {offsets = [0, 0], sizes = [8, 32], strides = [1, 1]} : vector<8x128xf32> to vector<8x32xf32>
    %c1 = arith.constant 1 : index
    %c0_13 = arith.constant 0 : index
    %c0_14 = arith.constant 0 : index
    %32 = vector.load %arg1[%c1, %c0_13, %c0_14] : memref<8x8x128xf32, #tpu.memory_space<vmem>>, vector<1x8x128xf32>
    %33 = vector.shape_cast %32 : vector<1x8x128xf32> to vector<8x128xf32>
    %cst_15 = arith.constant dense<0.000000e+00> : vector<8x128xf32>
    %34 = tpu.matmul %31, %9, %cst_15 {dimension_numbers = #tpu.dot_dimension_numbers<[1], [0], [0], [1], [0, 0, 1, 1], [], []>} : vector<8x32xf32>, vector<32x128xf32>, vector<8x128xf32> -> vector<8x128xf32>
    %35 = arith.addf %33, %34 : vector<8x128xf32>
    %cst_16 = arith.constant 0xFF800000 : f32
    %36 = vector.broadcast %cst_16 : f32 to vector<8x128xf32>
    %37 = arith.select %8, %35, %36 : vector<8x128xi1>, vector<8x128xf32>
    %cst_17 = arith.constant dense<0xFF800000> : vector<8xf32>
    %38 = vector.multi_reduction <maximumf>, %37, %cst_17 [1] : vector<8x128xf32> to vector<8xf32>
    %39 = vector.shape_cast %38 : vector<8xf32> to vector<8x1xf32>
    %40 = vector.broadcast %39 : vector<8x1xf32> to vector<8x128xf32>
    %41 = arith.subf %37, %40 : vector<8x128xf32>
    %42 = math.exp %41 : vector<8x128xf32>
    %cst_18 = arith.constant dense<0.000000e+00> : vector<8xf32>
    %43 = vector.multi_reduction <add>, %42, %cst_18 [1] : vector<8x128xf32> to vector<8xf32>
    %44 = vector.shape_cast %43 : vector<8xf32> to vector<8x1xf32>
    %45 = math.log %44 : vector<8x1xf32>
    %46 = vector.broadcast %45 : vector<8x1xf32> to vector<8x128xf32>
    %47 = arith.subf %41, %46 : vector<8x128xf32>
    %48 = arith.select %8, %47, %35 : vector<8x128xi1>, vector<8x128xf32>
    %c1_19 = arith.constant 1 : index
    %c0_20 = arith.constant 0 : index
    %c0_21 = arith.constant 0 : index
    %49 = vector.load %arg4[%c1_19, %c0_20, %c0_21] : memref<8x8x128xf32, #tpu.memory_space<vmem>>, vector<1x8x128xf32>
    %50 = vector.shape_cast %49 : vector<1x8x128xf32> to vector<8x128xf32>
    %51 = vector.shape_cast %48 : vector<8x128xf32> to vector<1x8x128xf32>
    tpu.vector_store %arg4[%c1_19, %c0_20, %c0_21], %51 {strides = array<i32>} : memref<8x8x128xf32, #tpu.memory_space<vmem>>, vector<1x8x128xf32>,
    %52 = vector.extract_strided_slice %35 {offsets = [0, 0], sizes = [8, 32], strides = [1, 1]} : vector<8x128xf32> to vector<8x32xf32>
    %c2 = arith.constant 2 : index
    %c0_22 = arith.constant 0 : index
    %c0_23 = arith.constant 0 : index
    %53 = vector.load %arg1[%c2, %c0_22, %c0_23] : memref<8x8x128xf32, #tpu.memory_space<vmem>>, vector<1x8x128xf32>
    %54 = vector.shape_cast %53 : vector<1x8x128xf32> to vector<8x128xf32>
    %cst_24 = arith.constant dense<0.000000e+00> : vector<8x128xf32>
    %55 = tpu.matmul %52, %9, %cst_24 {dimension_numbers = #tpu.dot_dimension_numbers<[1], [0], [0], [1], [0, 0, 1, 1], [], []>} : vector<8x32xf32>, vector<32x128xf32>, vector<8x128xf32> -> vector<8x128xf32>
    %56 = arith.addf %54, %55 : vector<8x128xf32>
    %cst_25 = arith.constant 0xFF800000 : f32
    %57 = vector.broadcast %cst_25 : f32 to vector<8x128xf32>
    %58 = arith.select %8, %56, %57 : vector<8x128xi1>, vector<8x128xf32>
    %cst_26 = arith.constant dense<0xFF800000> : vector<8xf32>
    %59 = vector.multi_reduction <maximumf>, %58, %cst_26 [1] : vector<8x128xf32> to vector<8xf32>
    %60 = vector.shape_cast %59 : vector<8xf32> to vector<8x1xf32>
    %61 = vector.broadcast %60 : vector<8x1xf32> to vector<8x128xf32>
    %62 = arith.subf %58, %61 : vector<8x128xf32>
    %63 = math.exp %62 : vector<8x128xf32>
    %cst_27 = arith.constant dense<0.000000e+00> : vector<8xf32>
    %64 = vector.multi_reduction <add>, %63, %cst_27 [1] : vector<8x128xf32> to vector<8xf32>
    %65 = vector.shape_cast %64 : vector<8xf32> to vector<8x1xf32>
    %66 = math.log %65 : vector<8x1xf32>
    %67 = vector.broadcast %66 : vector<8x1xf32> to vector<8x128xf32>
    %68 = arith.subf %62, %67 : vector<8x128xf32>
    %69 = arith.select %8, %68, %56 : vector<8x128xi1>, vector<8x128xf32>
    %c2_28 = arith.constant 2 : index
    %c0_29 = arith.constant 0 : index
    %c0_30 = arith.constant 0 : index
    %70 = vector.load %arg4[%c2_28, %c0_29, %c0_30] : memref<8x8x128xf32, #tpu.memory_space<vmem>>, vector<1x8x128xf32>
    %71 = vector.shape_cast %70 : vector<1x8x128xf32> to vector<8x128xf32>
    %72 = vector.shape_cast %69 : vector<8x128xf32> to vector<1x8x128xf32>
    tpu.vector_store %arg4[%c2_28, %c0_29, %c0_30], %72 {strides = array<i32>} : memref<8x8x128xf32, #tpu.memory_space<vmem>>, vector<1x8x128xf32>,
    %73 = vector.extract_strided_slice %56 {offsets = [0, 0], sizes = [8, 32], strides = [1, 1]} : vector<8x128xf32> to vector<8x32xf32>
    %c3 = arith.constant 3 : index
    %c0_31 = arith.constant 0 : index
    %c0_32 = arith.constant 0 : index
    %74 = vector.load %arg1[%c3, %c0_31, %c0_32] : memref<8x8x128xf32, #tpu.memory_space<vmem>>, vector<1x8x128xf32>
    %75 = vector.shape_cast %74 : vector<1x8x128xf32> to vector<8x128xf32>
    %cst_33 = arith.constant dense<0.000000e+00> : vector<8x128xf32>
    %76 = tpu.matmul %73, %9, %cst_33 {dimension_numbers = #tpu.dot_dimension_numbers<[1], [0], [0], [1], [0, 0, 1, 1], [], []>} : vector<8x32xf32>, vector<32x128xf32>, vector<8x128xf32> -> vector<8x128xf32>
    %77 = arith.addf %75, %76 : vector<8x128xf32>
    %cst_34 = arith.constant 0xFF800000 : f32
    %78 = vector.broadcast %cst_34 : f32 to vector<8x128xf32>
    %79 = arith.select %8, %77, %78 : vector<8x128xi1>, vector<8x128xf32>
    %cst_35 = arith.constant dense<0xFF800000> : vector<8xf32>
    %80 = vector.multi_reduction <maximumf>, %79, %cst_35 [1] : vector<8x128xf32> to vector<8xf32>
    %81 = vector.shape_cast %80 : vector<8xf32> to vector<8x1xf32>
    %82 = vector.broadcast %81 : vector<8x1xf32> to vector<8x128xf32>
    %83 = arith.subf %79, %82 : vector<8x128xf32>
    %84 = math.exp %83 : vector<8x128xf32>
    %cst_36 = arith.constant dense<0.000000e+00> : vector<8xf32>
    %85 = vector.multi_reduction <add>, %84, %cst_36 [1] : vector<8x128xf32> to vector<8xf32>
    %86 = vector.shape_cast %85 : vector<8xf32> to vector<8x1xf32>
    %87 = math.log %86 : vector<8x1xf32>
    %88 = vector.broadcast %87 : vector<8x1xf32> to vector<8x128xf32>
    %89 = arith.subf %83, %88 : vector<8x128xf32>
    %90 = arith.select %8, %89, %77 : vector<8x128xi1>, vector<8x128xf32>
    %c3_37 = arith.constant 3 : index
    %c0_38 = arith.constant 0 : index
    %c0_39 = arith.constant 0 : index
    %91 = vector.load %arg4[%c3_37, %c0_38, %c0_39] : memref<8x8x128xf32, #tpu.memory_space<vmem>>, vector<1x8x128xf32>
    %92 = vector.shape_cast %91 : vector<1x8x128xf32> to vector<8x128xf32>
    %93 = vector.shape_cast %90 : vector<8x128xf32> to vector<1x8x128xf32>
    tpu.vector_store %arg4[%c3_37, %c0_38, %c0_39], %93 {strides = array<i32>} : memref<8x8x128xf32, #tpu.memory_space<vmem>>, vector<1x8x128xf32>,
    %94 = vector.extract_strided_slice %77 {offsets = [0, 0], sizes = [8, 32], strides = [1, 1]} : vector<8x128xf32> to vector<8x32xf32>
    %c4 = arith.constant 4 : index
    %c0_40 = arith.constant 0 : index
    %c0_41 = arith.constant 0 : index
    %95 = vector.load %arg1[%c4, %c0_40, %c0_41] : memref<8x8x128xf32, #tpu.memory_space<vmem>>, vector<1x8x128xf32>
    %96 = vector.shape_cast %95 : vector<1x8x128xf32> to vector<8x128xf32>
    %cst_42 = arith.constant dense<0.000000e+00> : vector<8x128xf32>
    %97 = tpu.matmul %94, %9, %cst_42 {dimension_numbers = #tpu.dot_dimension_numbers<[1], [0], [0], [1], [0, 0, 1, 1], [], []>} : vector<8x32xf32>, vector<32x128xf32>, vector<8x128xf32> -> vector<8x128xf32>
    %98 = arith.addf %96, %97 : vector<8x128xf32>
    %cst_43 = arith.constant 0xFF800000 : f32
    %99 = vector.broadcast %cst_43 : f32 to vector<8x128xf32>
    %100 = arith.select %8, %98, %99 : vector<8x128xi1>, vector<8x128xf32>
    %cst_44 = arith.constant dense<0xFF800000> : vector<8xf32>
    %101 = vector.multi_reduction <maximumf>, %100, %cst_44 [1] : vector<8x128xf32> to vector<8xf32>
    %102 = vector.shape_cast %101 : vector<8xf32> to vector<8x1xf32>
    %103 = vector.broadcast %102 : vector<8x1xf32> to vector<8x128xf32>
    %104 = arith.subf %100, %103 : vector<8x128xf32>
    %105 = math.exp %104 : vector<8x128xf32>
    %cst_45 = arith.constant dense<0.000000e+00> : vector<8xf32>
    %106 = vector.multi_reduction <add>, %105, %cst_45 [1] : vector<8x128xf32> to vector<8xf32>
    %107 = vector.shape_cast %106 : vector<8xf32> to vector<8x1xf32>
    %108 = math.log %107 : vector<8x1xf32>
    %109 = vector.broadcast %108 : vector<8x1xf32> to vector<8x128xf32>
    %110 = arith.subf %104, %109 : vector<8x128xf32>
    %111 = arith.select %8, %110, %98 : vector<8x128xi1>, vector<8x128xf32>
    %c4_46 = arith.constant 4 : index
    %c0_47 = arith.constant 0 : index
    %c0_48 = arith.constant 0 : index
    %112 = vector.load %arg4[%c4_46, %c0_47, %c0_48] : memref<8x8x128xf32, #tpu.memory_space<vmem>>, vector<1x8x128xf32>
    %113 = vector.shape_cast %112 : vector<1x8x128xf32> to vector<8x128xf32>
    %114 = vector.shape_cast %111 : vector<8x128xf32> to vector<1x8x128xf32>
    tpu.vector_store %arg4[%c4_46, %c0_47, %c0_48], %114 {strides = array<i32>} : memref<8x8x128xf32, #tpu.memory_space<vmem>>, vector<1x8x128xf32>,
    %115 = vector.extract_strided_slice %98 {offsets = [0, 0], sizes = [8, 32], strides = [1, 1]} : vector<8x128xf32> to vector<8x32xf32>
    %c5 = arith.constant 5 : index
    %c0_49 = arith.constant 0 : index
    %c0_50 = arith.constant 0 : index
    %116 = vector.load %arg1[%c5, %c0_49, %c0_50] : memref<8x8x128xf32, #tpu.memory_space<vmem>>, vector<1x8x128xf32>
    %117 = vector.shape_cast %116 : vector<1x8x128xf32> to vector<8x128xf32>
    %cst_51 = arith.constant dense<0.000000e+00> : vector<8x128xf32>
    %118 = tpu.matmul %115, %9, %cst_51 {dimension_numbers = #tpu.dot_dimension_numbers<[1], [0], [0], [1], [0, 0, 1, 1], [], []>} : vector<8x32xf32>, vector<32x128xf32>, vector<8x128xf32> -> vector<8x128xf32>
    %119 = arith.addf %117, %118 : vector<8x128xf32>
    %cst_52 = arith.constant 0xFF800000 : f32
    %120 = vector.broadcast %cst_52 : f32 to vector<8x128xf32>
    %121 = arith.select %8, %119, %120 : vector<8x128xi1>, vector<8x128xf32>
    %cst_53 = arith.constant dense<0xFF800000> : vector<8xf32>
    %122 = vector.multi_reduction <maximumf>, %121, %cst_53 [1] : vector<8x128xf32> to vector<8xf32>
    %123 = vector.shape_cast %122 : vector<8xf32> to vector<8x1xf32>
    %124 = vector.broadcast %123 : vector<8x1xf32> to vector<8x128xf32>
    %125 = arith.subf %121, %124 : vector<8x128xf32>
    %126 = math.exp %125 : vector<8x128xf32>
    %cst_54 = arith.constant dense<0.000000e+00> : vector<8xf32>
    %127 = vector.multi_reduction <add>, %126, %cst_54 [1] : vector<8x128xf32> to vector<8xf32>
    %128 = vector.shape_cast %127 : vector<8xf32> to vector<8x1xf32>
    %129 = math.log %128 : vector<8x1xf32>
    %130 = vector.broadcast %129 : vector<8x1xf32> to vector<8x128xf32>
    %131 = arith.subf %125, %130 : vector<8x128xf32>
    %132 = arith.select %8, %131, %119 : vector<8x128xi1>, vector<8x128xf32>
    %c5_55 = arith.constant 5 : index
    %c0_56 = arith.constant 0 : index
    %c0_57 = arith.constant 0 : index
    %133 = vector.load %arg4[%c5_55, %c0_56, %c0_57] : memref<8x8x128xf32, #tpu.memory_space<vmem>>, vector<1x8x128xf32>
    %134 = vector.shape_cast %133 : vector<1x8x128xf32> to vector<8x128xf32>
    %135 = vector.shape_cast %132 : vector<8x128xf32> to vector<1x8x128xf32>
    tpu.vector_store %arg4[%c5_55, %c0_56, %c0_57], %135 {strides = array<i32>} : memref<8x8x128xf32, #tpu.memory_space<vmem>>, vector<1x8x128xf32>,
    %136 = vector.extract_strided_slice %119 {offsets = [0, 0], sizes = [8, 32], strides = [1, 1]} : vector<8x128xf32> to vector<8x32xf32>
    %c6 = arith.constant 6 : index
    %c0_58 = arith.constant 0 : index
    %c0_59 = arith.constant 0 : index
    %137 = vector.load %arg1[%c6, %c0_58, %c0_59] : memref<8x8x128xf32, #tpu.memory_space<vmem>>, vector<1x8x128xf32>
    %138 = vector.shape_cast %137 : vector<1x8x128xf32> to vector<8x128xf32>
    %cst_60 = arith.constant dense<0.000000e+00> : vector<8x128xf32>
    %139 = tpu.matmul %136, %9, %cst_60 {dimension_numbers = #tpu.dot_dimension_numbers<[1], [0], [0], [1], [0, 0, 1, 1], [], []>} : vector<8x32xf32>, vector<32x128xf32>, vector<8x128xf32> -> vector<8x128xf32>
    %140 = arith.addf %138, %139 : vector<8x128xf32>
    %cst_61 = arith.constant 0xFF800000 : f32
    %141 = vector.broadcast %cst_61 : f32 to vector<8x128xf32>
    %142 = arith.select %8, %140, %141 : vector<8x128xi1>, vector<8x128xf32>
    %cst_62 = arith.constant dense<0xFF800000> : vector<8xf32>
    %143 = vector.multi_reduction <maximumf>, %142, %cst_62 [1] : vector<8x128xf32> to vector<8xf32>
    %144 = vector.shape_cast %143 : vector<8xf32> to vector<8x1xf32>
    %145 = vector.broadcast %144 : vector<8x1xf32> to vector<8x128xf32>
    %146 = arith.subf %142, %145 : vector<8x128xf32>
    %147 = math.exp %146 : vector<8x128xf32>
    %cst_63 = arith.constant dense<0.000000e+00> : vector<8xf32>
    %148 = vector.multi_reduction <add>, %147, %cst_63 [1] : vector<8x128xf32> to vector<8xf32>
    %149 = vector.shape_cast %148 : vector<8xf32> to vector<8x1xf32>
    %150 = math.log %149 : vector<8x1xf32>
    %151 = vector.broadcast %150 : vector<8x1xf32> to vector<8x128xf32>
    %152 = arith.subf %146, %151 : vector<8x128xf32>
    %153 = arith.select %8, %152, %140 : vector<8x128xi1>, vector<8x128xf32>
    %c6_64 = arith.constant 6 : index
    %c0_65 = arith.constant 0 : index
    %c0_66 = arith.constant 0 : index
    %154 = vector.load %arg4[%c6_64, %c0_65, %c0_66] : memref<8x8x128xf32, #tpu.memory_space<vmem>>, vector<1x8x128xf32>
    %155 = vector.shape_cast %154 : vector<1x8x128xf32> to vector<8x128xf32>
    %156 = vector.shape_cast %153 : vector<8x128xf32> to vector<1x8x128xf32>
    tpu.vector_store %arg4[%c6_64, %c0_65, %c0_66], %156 {strides = array<i32>} : memref<8x8x128xf32, #tpu.memory_space<vmem>>, vector<1x8x128xf32>,
    %157 = vector.extract_strided_slice %140 {offsets = [0, 0], sizes = [8, 32], strides = [1, 1]} : vector<8x128xf32> to vector<8x32xf32>
    %c7 = arith.constant 7 : index
    %c0_67 = arith.constant 0 : index
    %c0_68 = arith.constant 0 : index
    %158 = vector.load %arg1[%c7, %c0_67, %c0_68] : memref<8x8x128xf32, #tpu.memory_space<vmem>>, vector<1x8x128xf32>
    %159 = vector.shape_cast %158 : vector<1x8x128xf32> to vector<8x128xf32>
    %cst_69 = arith.constant dense<0.000000e+00> : vector<8x128xf32>
    %160 = tpu.matmul %157, %9, %cst_69 {dimension_numbers = #tpu.dot_dimension_numbers<[1], [0], [0], [1], [0, 0, 1, 1], [], []>} : vector<8x32xf32>, vector<32x128xf32>, vector<8x128xf32> -> vector<8x128xf32>
    %161 = arith.addf %159, %160 : vector<8x128xf32>
    %cst_70 = arith.constant 0xFF800000 : f32
    %162 = vector.broadcast %cst_70 : f32 to vector<8x128xf32>
    %163 = arith.select %8, %161, %162 : vector<8x128xi1>, vector<8x128xf32>
    %cst_71 = arith.constant dense<0xFF800000> : vector<8xf32>
    %164 = vector.multi_reduction <maximumf>, %163, %cst_71 [1] : vector<8x128xf32> to vector<8xf32>
    %165 = vector.shape_cast %164 : vector<8xf32> to vector<8x1xf32>
    %166 = vector.broadcast %165 : vector<8x1xf32> to vector<8x128xf32>
    %167 = arith.subf %163, %166 : vector<8x128xf32>
    %168 = math.exp %167 : vector<8x128xf32>
    %cst_72 = arith.constant dense<0.000000e+00> : vector<8xf32>
    %169 = vector.multi_reduction <add>, %168, %cst_72 [1] : vector<8x128xf32> to vector<8xf32>
    %170 = vector.shape_cast %169 : vector<8xf32> to vector<8x1xf32>
    %171 = math.log %170 : vector<8x1xf32>
    %172 = vector.broadcast %171 : vector<8x1xf32> to vector<8x128xf32>
    %173 = arith.subf %167, %172 : vector<8x128xf32>
    %174 = arith.select %8, %173, %161 : vector<8x128xi1>, vector<8x128xf32>
    %c7_73 = arith.constant 7 : index
    %c0_74 = arith.constant 0 : index
    %c0_75 = arith.constant 0 : index
    %175 = vector.load %arg4[%c7_73, %c0_74, %c0_75] : memref<8x8x128xf32, #tpu.memory_space<vmem>>, vector<1x8x128xf32>
    %176 = vector.shape_cast %175 : vector<1x8x128xf32> to vector<8x128xf32>
    %177 = vector.shape_cast %174 : vector<8x128xf32> to vector<1x8x128xf32>
    tpu.vector_store %arg4[%c7_73, %c0_74, %c0_75], %177 {strides = array<i32>} : memref<8x8x128xf32, #tpu.memory_space<vmem>>, vector<1x8x128xf32>,
    %178 = vector.extract_strided_slice %161 {offsets = [0, 0], sizes = [8, 32], strides = [1, 1]} : vector<8x128xf32> to vector<8x32xf32>
    %c0_76 = arith.constant 0 : index
    %c0_77 = arith.constant 0 : index
    %179 = vector.load %arg5[%c0_76, %c0_77] : memref<8x32xf32, #tpu.memory_space<vmem>>, vector<8x32xf32>
    tpu.vector_store %arg5[%c0_76, %c0_77], %178 {strides = array<i32>} : memref<8x32xf32, #tpu.memory_space<vmem>>, vector<8x32xf32>,
    return
  }
  func.func @transform_0(%arg0: i32) -> (i32, i32, i32) {
    %c0_i32 = arith.constant 0 : i32
    %c0_i32_0 = arith.constant 0 : i32
    %c0_i32_1 = arith.constant 0 : i32
    return %arg0, %c0_i32, %c0_i32_0 : i32, i32, i32
  }
  func.func @transform_1(%arg0: i32) -> (i32, i32) {
    %c0_i32 = arith.constant 0 : i32
    %c0_i32_0 = arith.constant 0 : i32
    %c0_i32_1 = arith.constant 0 : i32
    return %c0_i32, %c0_i32_0 : i32, i32
  }
  func.func @transform_2(%arg0: i32) -> (i32, i32) {
    %c0_i32 = arith.constant 0 : i32
    %c0_i32_0 = arith.constant 0 : i32
    %c0_i32_1 = arith.constant 0 : i32
    return %c0_i32, %c0_i32_0 : i32, i32
  }
  func.func @transform_3(%arg0: i32) -> (i32, i32, i32) {
    %c0_i32 = arith.constant 0 : i32
    %c0_i32_0 = arith.constant 0 : i32
    %c0_i32_1 = arith.constant 0 : i32
    return %arg0, %c0_i32, %c0_i32_0 : i32, i32, i32
  }
}

</mosaic_0001>

<llo_original>
// kernel: tpu_custom_call.1
$region0: #{tpu_custom_call.1}
  #allocation0 [shape = 'u32[]', space=smem, size = 0x4, offset = 0x4, fixed_abs, tag = 'smem constant byte address 0x4 - core index']
  #allocation1 [shape = 'u32[144,128]{1,0:T(1,128)}', space=vmem, size = 0x12000, scoped, tag = 'internal scratch']
  #allocation2 [shape = 'f32[8,32]{1,0:T(8,128)}', space=vmem, size = 0x1000, scoped, tag = 'scratch operand']
  %s0 = inlined_call_operand.hbm [shape: f32[8,8,128], index: 0, kind: input, shape index: {}]
  %s1 = inlined_call_operand.hbm [shape: f32[8,32], index: 1, kind: input, shape index: {}]
  %s2 = inlined_call_operand.hbm [shape: f32[32,128], index: 2, kind: input, shape index: {}]
  %s3 = inlined_call_operand.hbm [shape: f32[8,8,128], index: 3, kind: output, shape index: {}]
  %s4 = sld [smem:[#allocation0]]
  $region38: #{tpu_custom_call.1} parent=0
    _
  %s6 = ssub.s32 1, %s4
  %s7 = scalar_select 0, %s6, %s4
  $region1: #{tpu_custom_call.1} parent=0
    #allocation3 [shape = 'u8[32768]{0}', space=vmem, size = 0x8000, scoped, tag = 'input window, operand 0, single buffered']
    #allocation4 [shape = 's32[1]{0}', space=sflag, size = 0x4, scoped, tag = 'scoped memory for tpu_custom_call.1']
    #allocation5 [shape = 's32[1]{0}', space=sflag, size = 0x4, scoped, tag = 'scoped memory for tpu_custom_call.1']
    #allocation6 [shape = 'u8[4096]{0}', space=vmem, size = 0x1000, scoped, tag = 'input window, operand 1, single buffered']
    #allocation7 [shape = 's32[1]{0}', space=sflag, size = 0x4, scoped, tag = 'scoped memory for tpu_custom_call.1']
    #allocation8 [shape = 'u8[16384]{0}', space=vmem, size = 0x4000, scoped, tag = 'input window, operand 2, single buffered']
    #allocation9 [shape = 'u8[32768]{0}', space=vmem, size = 0x8000, scoped, tag = 'output window, operand 0, single buffered']
    %8 = vsyncpa [#allocation4], 0
    %9 = vsyncpa [#allocation7], 0
    %10 = vsyncpa [#allocation5], 0
    // Predicated region
    $region2: #{tpu_custom_call.1} parent=1 // pred_check
      _
    $region3: #{tpu_custom_call.1} parent=1 // pred_check_branch
      %12 = sbr.rel (0) target = $region5
    $region4: #{tpu_custom_call.1} parent=1 // pred_region
      %s14 = ssub.s32 1024, 1024
      %15 = vsyncadd [#allocation4], %s14
      %s16 = sshll.u32 [#allocation3], 4
      %s17 = int_to_ptr.vmem [resolvable:$true] %s16
      %22 = dma.hbm_to_vmem [thread:$0]  %s0, 1024, %s17, [#allocation4], 128, 128, 8
    $region5: #{tpu_custom_call.1} parent=1 // pred_fallthru
      _
    // Predicated region
    $region6: #{tpu_custom_call.1} parent=1 // pred_check
      _
    $region7: #{tpu_custom_call.1} parent=1 // pred_check_branch
      %24 = sbr.rel (0) target = $region9
    $region8: #{tpu_custom_call.1} parent=1 // pred_region
      %s26 = ssub.s32 128, 128
      %27 = vsyncadd [#allocation7], %s26
      %s29 = sshll.u32 [#allocation6], 4
      %s30 = int_to_ptr.vmem [resolvable:$true] %s29
      %32 = dma.hbm_to_vmem [thread:$0]  %s1, 128, %s30, [#allocation7]
    $region9: #{tpu_custom_call.1} parent=1 // pred_fallthru
      _
    // Predicated region
    $region10: #{tpu_custom_call.1} parent=1 // pred_check
      _
    $region11: #{tpu_custom_call.1} parent=1 // pred_check_branch
      %34 = sbr.rel (0) target = $region13
    $region12: #{tpu_custom_call.1} parent=1 // pred_region
      %s36 = ssub.s32 512, 512
      %37 = vsyncadd [#allocation7], %s36
      %s38 = sshll.u32 [#allocation8], 4
      %s39 = int_to_ptr.vmem [resolvable:$true] %s38
      %44 = dma.hbm_to_vmem [thread:$0]  %s2, 512, %s39, [#allocation7], 128, 128, 8
    $region13: #{tpu_custom_call.1} parent=1 // pred_fallthru
      _
    // Predicated region
    $region14: #{tpu_custom_call.1} parent=1 // pred_check
      _
    $region15: #{tpu_custom_call.1} parent=1 // pred_check_branch
      %46 = sbr.rel (0) target = $region17
    $region16: #{tpu_custom_call.1} parent=1 // pred_region
      %47 = dma.done [#allocation4], 1024
    $region17: #{tpu_custom_call.1} parent=1 // pred_fallthru
      _
    // Predicated region
    $region18: #{tpu_custom_call.1} parent=1 // pred_check
      _
    $region19: #{tpu_custom_call.1} parent=1 // pred_check_branch
      %49 = sbr.rel (0) target = $region21
    $region20: #{tpu_custom_call.1} parent=1 // pred_region
      %50 = dma.done [#allocation7], 128
    $region21: #{tpu_custom_call.1} parent=1 // pred_fallthru
      _
    // Predicated region
    $region22: #{tpu_custom_call.1} parent=1 // pred_check
      _
    $region23: #{tpu_custom_call.1} parent=1 // pred_check_branch
      %52 = sbr.rel (0) target = $region25
    $region24: #{tpu_custom_call.1} parent=1 // pred_region
      %53 = dma.done [#allocation7], 512
    $region25: #{tpu_custom_call.1} parent=1 // pred_fallthru
      _
    %p54 = scmp.eq.s32.totalorder 0, 0
    // Predicated region
    $region26: #{tpu_custom_call.1} parent=1 // pred_check
      %p55 = pneg %p54
    $region27: #{tpu_custom_call.1} parent=1 // pred_check_branch
      %57 = sbr.rel (%p55) target = $region29
    $region28: #{tpu_custom_call.1} parent=1 // pred_region
      %v58 = vld [vmem:[#allocation6] sm:$0xff]
      %vm59 = vcmask 261120
      %60 = vst.msk [vmem:[#allocation2] sm:$0xff] %vm59, %v58
    $region29: #{tpu_custom_call.1} parent=1 // pred_fallthru
      _
    %v61 = vlaneseq
    %v62 = vand.u32 %v61, 127
    %vm63 = vcmp.ge.s32.totalorder %v62, 32
    %vm64 = vcmp.lt.s32.totalorder %v62, 40
    %vm65 = vmand %vm63, %vm64
    %v66 = vld [vmem:[#allocation8] sm:$0xff]
    %v67 = vld [vmem:[#allocation8 + $0x8] sm:$0xff]
    %v68 = vld [vmem:[#allocation8 + $0x10] sm:$0xff]
    %v69 = vld [vmem:[#allocation8 + $0x18] sm:$0xff]
    %v70 = vld [vmem:[#allocation2] sm:$0xff]
    %v71 = vld [vmem:[#allocation3] sm:$0xff]
    %vm72 = vcmask 261120
    %v74 = vsel %vm72, %v70, 0
    %76 = vmatprep.subr.mxu0 0.0
    %77 = vmatpush1.msra.mxu0 %v66
    %78 = vmatprep.subr.mxu0 0.0
    %79 = vmatpush1.msra.mxu0 %v67
    %80 = vmatprep.subr.mxu0 0.0
    %81 = vmatpush1.msra.mxu0 %v68
    %82 = vmatprep.subr.mxu0 0.0
    %83 = vmatpush1.msra.mxu0 %v69
    %84 = vmatprep.subr.mxu0 0.0
    %85 = vmatpush1.msra.mxu0 0.0
    %86 = vmatprep.subr.mxu0 0.0
    %87 = vmatpush1.msra.mxu0 0.0
    %88 = vmatprep.subr.mxu0 0.0
    %89 = vmatpush1.msra.mxu0 0.0
    %90 = vmatprep.subr.mxu0 0.0
    %91 = vmatpush1.msra.mxu0 0.0
    %92 = vmatprep.subr.mxu0 0.0
    %93 = vmatpush1.msra.mxu0 0.0
    %94 = vmatprep.subr.mxu0 0.0
    %95 = vmatpush1.msra.mxu0 0.0
    %96 = vmatprep.subr.mxu0 0.0
    %97 = vmatpush1.msra.mxu0 0.0
    %98 = vmatprep.subr.mxu0 0.0
    %99 = vmatpush1.msra.mxu0 0.0
    %100 = vmatprep.subr.mxu0 0.0
    %101 = vmatpush1.msra.mxu0 0.0
    %102 = vmatprep.subr.mxu0 0.0
    %103 = vmatpush1.msra.mxu0 0.0
    %104 = vmatprep.subr.mxu0 0.0
    %105 = vmatpush1.msra.mxu0 0.0
    %106 = vmatprep.subr.mxu0 0.0
    %107 = vmatpush1.msra.mxu0 0.0
    %108 = vmatprep.subr.mxu0 0.0
    %109 = vmatpush1.msra.mxu0 0.0
    %110 = vmatprep.subr.mxu0 0.0
    %111 = vmatpush1.msra.mxu0 0.0
    %112 = vmatprep.subr.mxu0 0.0
    %113 = vmatpush1.msra.mxu0 0.0
    %114 = vmatprep.subr.mxu0 0.0
    %115 = vmatpush1.msra.mxu0 0.0
    %116 = vmatprep.subr.mxu0 0.0
    %117 = vmatpush1.msra.mxu0 0.0
    %118 = vmatprep.subr.mxu0 0.0
    %119 = vmatpush1.msra.mxu0 0.0
    %120 = vmatprep.subr.mxu0 0.0
    %121 = vmatpush1.msra.mxu0 0.0
    %122 = vmatprep.subr.mxu0 0.0
    %123 = vmatpush1.msra.mxu0 0.0
    %124 = vmatprep.subr.mxu0 0.0
    %125 = vmatpush1.msra.mxu0 0.0
    %126 = vmatprep.subr.mxu0 0.0
    %127 = vmatpush1.msra.mxu0 0.0
    %128 = vmatprep.subr.mxu0 0.0
    %129 = vmatpush1.msra.mxu0 0.0
    %130 = vmatprep.subr.mxu0 0.0
    %131 = vmatpush1.msra.mxu0 0.0
    %132 = vmatprep.subr.mxu0 0.0
    %133 = vmatpush1.msra.mxu0 0.0
    %134 = vmatprep.subr.mxu0 0.0
    %135 = vmatpush1.msra.mxu0 0.0
    %136 = vmatprep.subr.mxu0 0.0
    %137 = vmatpush1.msra.mxu0 0.0
    %138 = vmatprep.subr.mxu0 0.0
    %139 = vmatpush1.msra.mxu0 0.0
    %140 = vmatprep.mubr.f32.mxu0 0.0
    %141 = vmatmul.mubr.f32.gmra.mrb[0].mxu0 %v74
    %v142 = vpop.f32.mrb[0].mxu0
    %v143 = vadd.f32 0.0, %v142
    %v144 = vpop.f32.mrb[0].mxu0
    %145 = vdwg.mxu0
    %v146 = vadd.f32 %v71, %v143
    %v147 = vsel %vm65, %v146, -inf
    %148 = vmax.xlane.f32.xlu0 %v147
    %v149 = vpop.xlane.xlu0 %148
    %v150 = vsub.f32 %v147, %v149
    %v151 = vmul.f32 %v150, 1.442695
    %v152 = vpow.pop %v151
    %153 = vadd.xlane.f32.xlu0 %v152
    %v154 = vpop.xlane.xlu0 %153
    %v155 = vlog2.pop %v154
    %v156 = vmul.f32 %v155, 0.6931472
    %v157 = vsub.f32 %v150, %v156
    %v158 = vsel %vm65, %v157, %v146
    %159 = vst [vmem:[#allocation9] sm:$0xff] %v158
    %s160 = scalar_lea.vmem [#allocation3], 8
    %v161 = vld [vmem:[%s160] sm:$0xff]
    %v163 = vsel %vm72, %v146, 0
    %165 = vmatprep.subr.mxu0 0.0
    %166 = vmatpush1.msra.mxu0 %v66
    %167 = vmatprep.subr.mxu0 0.0
    %168 = vmatpush1.msra.mxu0 %v67
    %169 = vmatprep.subr.mxu0 0.0
    %170 = vmatpush1.msra.mxu0 %v68
    %171 = vmatprep.subr.mxu0 0.0
    %172 = vmatpush1.msra.mxu0 %v69
    %173 = vmatprep.subr.mxu0 0.0
    %174 = vmatpush1.msra.mxu0 0.0
    %175 = vmatprep.subr.mxu0 0.0
    %176 = vmatpush1.msra.mxu0 0.0
    %177 = vmatprep.subr.mxu0 0.0
    %178 = vmatpush1.msra.mxu0 0.0
    %179 = vmatprep.subr.mxu0 0.0
    %180 = vmatpush1.msra.mxu0 0.0
    %181 = vmatprep.subr.mxu0 0.0
    %182 = vmatpush1.msra.mxu0 0.0
    %183 = vmatprep.subr.mxu0 0.0
    %184 = vmatpush1.msra.mxu0 0.0
    %185 = vmatprep.subr.mxu0 0.0
    %186 = vmatpush1.msra.mxu0 0.0
    %187 = vmatprep.subr.mxu0 0.0
    %188 = vmatpush1.msra.mxu0 0.0
    %189 = vmatprep.subr.mxu0 0.0
    %190 = vmatpush1.msra.mxu0 0.0
    %191 = vmatprep.subr.mxu0 0.0
    %192 = vmatpush1.msra.mxu0 0.0
    %193 = vmatprep.subr.mxu0 0.0
    %194 = vmatpush1.msra.mxu0 0.0
    %195 = vmatprep.subr.mxu0 0.0
    %196 = vmatpush1.msra.mxu0 0.0
    %197 = vmatprep.subr.mxu0 0.0
    %198 = vmatpush1.msra.mxu0 0.0
    %199 = vmatprep.subr.mxu0 0.0
    %200 = vmatpush1.msra.mxu0 0.0
    %201 = vmatprep.subr.mxu0 0.0
    %202 = vmatpush1.msra.mxu0 0.0
    %203 = vmatprep.subr.mxu0 0.0
    %204 = vmatpush1.msra.mxu0 0.0
    %205 = vmatprep.subr.mxu0 0.0
    %206 = vmatpush1.msra.mxu0 0.0
    %207 = vmatprep.subr.mxu0 0.0
    %208 = vmatpush1.msra.mxu0 0.0
    %209 = vmatprep.subr.mxu0 0.0
    %210 = vmatpush1.msra.mxu0 0.0
    %211 = vmatprep.subr.mxu0 0.0
    %212 = vmatpush1.msra.mxu0 0.0
    %213 = vmatprep.subr.mxu0 0.0
    %214 = vmatpush1.msra.mxu0 0.0
    %215 = vmatprep.subr.mxu0 0.0
    %216 = vmatpush1.msra.mxu0 0.0
    %217 = vmatprep.subr.mxu0 0.0
    %218 = vmatpush1.msra.mxu0 0.0
    %219 = vmatprep.subr.mxu0 0.0
    %220 = vmatpush1.msra.mxu0 0.0
    %221 = vmatprep.subr.mxu0 0.0
    %222 = vmatpush1.msra.mxu0 0.0
    %223 = vmatprep.subr.mxu0 0.0
    %224 = vmatpush1.msra.mxu0 0.0
    %225 = vmatprep.subr.mxu0 0.0
    %226 = vmatpush1.msra.mxu0 0.0
    %227 = vmatprep.subr.mxu0 0.0
    %228 = vmatpush1.msra.mxu0 0.0
    %229 = vmatprep.mubr.f32.mxu0 0.0
    %230 = vmatmul.mubr.f32.gmra.mrb[0].mxu0 %v163
    %v231 = vpop.f32.mrb[0].mxu0
    %v232 = vadd.f32 0.0, %v231
    %v233 = vpop.f32.mrb[0].mxu0
    %234 = vdwg.mxu0
    %v235 = vadd.f32 %v161, %v232
    %v236 = vsel %vm65, %v235, -inf
    %237 = vmax.xlane.f32.xlu0 %v236
    %v238 = vpop.xlane.xlu0 %237
    %v239 = vsub.f32 %v236, %v238
    %v240 = vmul.f32 %v239, 1.442695
    %v241 = vpow.pop %v240
    %242 = vadd.xlane.f32.xlu0 %v241
    %v243 = vpop.xlane.xlu0 %242
    %v244 = vlog2.pop %v243
    %v245 = vmul.f32 %v244, 0.6931472
    %v246 = vsub.f32 %v239, %v245
    %v247 = vsel %vm65, %v246, %v235
    %s248 = scalar_lea.vmem [#allocation9], 8
    %249 = vst [vmem:[%s248] sm:$0xff] %v247
    %s250 = scalar_lea.vmem [#allocation3], 16
    %v251 = vld [vmem:[%s250] sm:$0xff]
    %v253 = vsel %vm72, %v235, 0
    %255 = vmatprep.subr.mxu0 0.0
    %256 = vmatpush1.msra.mxu0 %v66
    %257 = vmatprep.subr.mxu0 0.0
    %258 = vmatpush1.msra.mxu0 %v67
    %259 = vmatprep.subr.mxu0 0.0
    %260 = vmatpush1.msra.mxu0 %v68
    %261 = vmatprep.subr.mxu0 0.0
    %262 = vmatpush1.msra.mxu0 %v69
    %263 = vmatprep.subr.mxu0 0.0
    %264 = vmatpush1.msra.mxu0 0.0
    %265 = vmatprep.subr.mxu0 0.0
    %266 = vmatpush1.msra.mxu0 0.0
    %267 = vmatprep.subr.mxu0 0.0
    %268 = vmatpush1.msra.mxu0 0.0
    %269 = vmatprep.subr.mxu0 0.0
    %270 = vmatpush1.msra.mxu0 0.0
    %271 = vmatprep.subr.mxu0 0.0
    %272 = vmatpush1.msra.mxu0 0.0
    %273 = vmatprep.subr.mxu0 0.0
    %274 = vmatpush1.msra.mxu0 0.0
    %275 = vmatprep.subr.mxu0 0.0
    %276 = vmatpush1.msra.mxu0 0.0
    %277 = vmatprep.subr.mxu0 0.0
    %278 = vmatpush1.msra.mxu0 0.0
    %279 = vmatprep.subr.mxu0 0.0
    %280 = vmatpush1.msra.mxu0 0.0
    %281 = vmatprep.subr.mxu0 0.0
    %282 = vmatpush1.msra.mxu0 0.0
    %283 = vmatprep.subr.mxu0 0.0
    %284 = vmatpush1.msra.mxu0 0.0
    %285 = vmatprep.subr.mxu0 0.0
    %286 = vmatpush1.msra.mxu0 0.0
    %287 = vmatprep.subr.mxu0 0.0
    %288 = vmatpush1.msra.mxu0 0.0
    %289 = vmatprep.subr.mxu0 0.0
    %290 = vmatpush1.msra.mxu0 0.0
    %291 = vmatprep.subr.mxu0 0.0
    %292 = vmatpush1.msra.mxu0 0.0
    %293 = vmatprep.subr.mxu0 0.0
    %294 = vmatpush1.msra.mxu0 0.0
    %295 = vmatprep.subr.mxu0 0.0
    %296 = vmatpush1.msra.mxu0 0.0
    %297 = vmatprep.subr.mxu0 0.0
    %298 = vmatpush1.msra.mxu0 0.0
    %299 = vmatprep.subr.mxu0 0.0
    %300 = vmatpush1.msra.mxu0 0.0
    %301 = vmatprep.subr.mxu0 0.0
    %302 = vmatpush1.msra.mxu0 0.0
    %303 = vmatprep.subr.mxu0 0.0
    %304 = vmatpush1.msra.mxu0 0.0
    %305 = vmatprep.subr.mxu0 0.0
    %306 = vmatpush1.msra.mxu0 0.0
    %307 = vmatprep.subr.mxu0 0.0
    %308 = vmatpush1.msra.mxu0 0.0
    %309 = vmatprep.subr.mxu0 0.0
    %310 = vmatpush1.msra.mxu0 0.0
    %311 = vmatprep.subr.mxu0 0.0
    %312 = vmatpush1.msra.mxu0 0.0
    %313 = vmatprep.subr.mxu0 0.0
    %314 = vmatpush1.msra.mxu0 0.0
    %315 = vmatprep.subr.mxu0 0.0
    %316 = vmatpush1.msra.mxu0 0.0
    %317 = vmatprep.subr.mxu0 0.0
    %318 = vmatpush1.msra.mxu0 0.0
    %319 = vmatprep.mubr.f32.mxu0 0.0
    %320 = vmatmul.mubr.f32.gmra.mrb[0].mxu0 %v253
    %v321 = vpop.f32.mrb[0].mxu0
    %v322 = vadd.f32 0.0, %v321
    %v323 = vpop.f32.mrb[0].mxu0
    %324 = vdwg.mxu0
    %v325 = vadd.f32 %v251, %v322
    %v326 = vsel %vm65, %v325, -inf
    %327 = vmax.xlane.f32.xlu0 %v326
    %v328 = vpop.xlane.xlu0 %327
    %v329 = vsub.f32 %v326, %v328
    %v330 = vmul.f32 %v329, 1.442695
    %v331 = vpow.pop %v330
    %332 = vadd.xlane.f32.xlu0 %v331
    %v333 = vpop.xlane.xlu0 %332
    %v334 = vlog2.pop %v333
    %v335 = vmul.f32 %v334, 0.6931472
    %v336 = vsub.f32 %v329, %v335
    %v337 = vsel %vm65, %v336, %v325
    %s338 = scalar_lea.vmem [#allocation9], 16
    %339 = vst [vmem:[%s338] sm:$0xff] %v337
    %s340 = scalar_lea.vmem [#allocation3], 24
    %v341 = vld [vmem:[%s340] sm:$0xff]
    %v343 = vsel %vm72, %v325, 0
    %345 = vmatprep.subr.mxu0 0.0
    %346 = vmatpush1.msra.mxu0 %v66
    %347 = vmatprep.subr.mxu0 0.0
    %348 = vmatpush1.msra.mxu0 %v67
    %349 = vmatprep.subr.mxu0 0.0
    %350 = vmatpush1.msra.mxu0 %v68
    %351 = vmatprep.subr.mxu0 0.0
    %352 = vmatpush1.msra.mxu0 %v69
    %353 = vmatprep.subr.mxu0 0.0
    %354 = vmatpush1.msra.mxu0 0.0
    %355 = vmatprep.subr.mxu0 0.0
    %356 = vmatpush1.msra.mxu0 0.0
    %357 = vmatprep.subr.mxu0 0.0
    %358 = vmatpush1.msra.mxu0 0.0
    %359 = vmatprep.subr.mxu0 0.0
    %360 = vmatpush1.msra.mxu0 0.0
    %361 = vmatprep.subr.mxu0 0.0
    %362 = vmatpush1.msra.mxu0 0.0
    %363 = vmatprep.subr.mxu0 0.0
    %364 = vmatpush1.msra.mxu0 0.0
    %365 = vmatprep.subr.mxu0 0.0
    %366 = vmatpush1.msra.mxu0 0.0
    %367 = vmatprep.subr.mxu0 0.0
    %368 = vmatpush1.msra.mxu0 0.0
    %369 = vmatprep.subr.mxu0 0.0
    %370 = vmatpush1.msra.mxu0 0.0
    %371 = vmatprep.subr.mxu0 0.0
    %372 = vmatpush1.msra.mxu0 0.0
    %373 = vmatprep.subr.mxu0 0.0
    %374 = vmatpush1.msra.mxu0 0.0
    %375 = vmatprep.subr.mxu0 0.0
    %376 = vmatpush1.msra.mxu0 0.0
    %377 = vmatprep.subr.mxu0 0.0
    %378 = vmatpush1.msra.mxu0 0.0
    %379 = vmatprep.subr.mxu0 0.0
    %380 = vmatpush1.msra.mxu0 0.0
    %381 = vmatprep.subr.mxu0 0.0
    %382 = vmatpush1.msra.mxu0 0.0
    %383 = vmatprep.subr.mxu0 0.0
    %384 = vmatpush1.msra.mxu0 0.0
    %385 = vmatprep.subr.mxu0 0.0
    %386 = vmatpush1.msra.mxu0 0.0
    %387 = vmatprep.subr.mxu0 0.0
    %388 = vmatpush1.msra.mxu0 0.0
    %389 = vmatprep.subr.mxu0 0.0
    %390 = vmatpush1.msra.mxu0 0.0
    %391 = vmatprep.subr.mxu0 0.0
    %392 = vmatpush1.msra.mxu0 0.0
    %393 = vmatprep.subr.mxu0 0.0
    %394 = vmatpush1.msra.mxu0 0.0
    %395 = vmatprep.subr.mxu0 0.0
    %396 = vmatpush1.msra.mxu0 0.0
    %397 = vmatprep.subr.mxu0 0.0
    %398 = vmatpush1.msra.mxu0 0.0
    %399 = vmatprep.subr.mxu0 0.0
    %400 = vmatpush1.msra.mxu0 0.0
    %401 = vmatprep.subr.mxu0 0.0
    %402 = vmatpush1.msra.mxu0 0.0
    %403 = vmatprep.subr.mxu0 0.0
    %404 = vmatpush1.msra.mxu0 0.0
    %405 = vmatprep.subr.mxu0 0.0
    %406 = vmatpush1.msra.mxu0 0.0
    %407 = vmatprep.subr.mxu0 0.0
    %408 = vmatpush1.msra.mxu0 0.0
    %409 = vmatprep.mubr.f32.mxu0 0.0
    %410 = vmatmul.mubr.f32.gmra.mrb[0].mxu0 %v343
    %v411 = vpop.f32.mrb[0].mxu0
    %v412 = vadd.f32 0.0, %v411
    %v413 = vpop.f32.mrb[0].mxu0
    %414 = vdwg.mxu0
    %v415 = vadd.f32 %v341, %v412
    %v416 = vsel %vm65, %v415, -inf
    %417 = vmax.xlane.f32.xlu0 %v416
    %v418 = vpop.xlane.xlu0 %417
    %v419 = vsub.f32 %v416, %v418
    %v420 = vmul.f32 %v419, 1.442695
    %v421 = vpow.pop %v420
    %422 = vadd.xlane.f32.xlu0 %v421
    %v423 = vpop.xlane.xlu0 %422
    %v424 = vlog2.pop %v423
    %v425 = vmul.f32 %v424, 0.6931472
    %v426 = vsub.f32 %v419, %v425
    %v427 = vsel %vm65, %v426, %v415
    %s428 = scalar_lea.vmem [#allocation9], 24
    %429 = vst [vmem:[%s428] sm:$0xff] %v427
    %s430 = scalar_lea.vmem [#allocation3], 32
    %v431 = vld [vmem:[%s430] sm:$0xff]
    %v433 = vsel %vm72, %v415, 0
    %435 = vmatprep.subr.mxu0 0.0
    %436 = vmatpush1.msra.mxu0 %v66
    %437 = vmatprep.subr.mxu0 0.0
    %438 = vmatpush1.msra.mxu0 %v67
    %439 = vmatprep.subr.mxu0 0.0
    %440 = vmatpush1.msra.mxu0 %v68
    %441 = vmatprep.subr.mxu0 0.0
    %442 = vmatpush1.msra.mxu0 %v69
    %443 = vmatprep.subr.mxu0 0.0
    %444 = vmatpush1.msra.mxu0 0.0
    %445 = vmatprep.subr.mxu0 0.0
    %446 = vmatpush1.msra.mxu0 0.0
    %447 = vmatprep.subr.mxu0 0.0
    %448 = vmatpush1.msra.mxu0 0.0
    %449 = vmatprep.subr.mxu0 0.0
    %450 = vmatpush1.msra.mxu0 0.0
    %451 = vmatprep.subr.mxu0 0.0
    %452 = vmatpush1.msra.mxu0 0.0
    %453 = vmatprep.subr.mxu0 0.0
    %454 = vmatpush1.msra.mxu0 0.0
    %455 = vmatprep.subr.mxu0 0.0
    %456 = vmatpush1.msra.mxu0 0.0
    %457 = vmatprep.subr.mxu0 0.0
    %458 = vmatpush1.msra.mxu0 0.0
    %459 = vmatprep.subr.mxu0 0.0
    %460 = vmatpush1.msra.mxu0 0.0
    %461 = vmatprep.subr.mxu0 0.0
    %462 = vmatpush1.msra.mxu0 0.0
    %463 = vmatprep.subr.mxu0 0.0
    %464 = vmatpush1.msra.mxu0 0.0
    %465 = vmatprep.subr.mxu0 0.0
    %466 = vmatpush1.msra.mxu0 0.0
    %467 = vmatprep.subr.mxu0 0.0
    %468 = vmatpush1.msra.mxu0 0.0
    %469 = vmatprep.subr.mxu0 0.0
    %470 = vmatpush1.msra.mxu0 0.0
    %471 = vmatprep.subr.mxu0 0.0
    %472 = vmatpush1.msra.mxu0 0.0
    %473 = vmatprep.subr.mxu0 0.0
    %474 = vmatpush1.msra.mxu0 0.0
    %475 = vmatprep.subr.mxu0 0.0
    %476 = vmatpush1.msra.mxu0 0.0
    %477 = vmatprep.subr.mxu0 0.0
    %478 = vmatpush1.msra.mxu0 0.0
    %479 = vmatprep.subr.mxu0 0.0
    %480 = vmatpush1.msra.mxu0 0.0
    %481 = vmatprep.subr.mxu0 0.0
    %482 = vmatpush1.msra.mxu0 0.0
    %483 = vmatprep.subr.mxu0 0.0
    %484 = vmatpush1.msra.mxu0 0.0
    %485 = vmatprep.subr.mxu0 0.0
    %486 = vmatpush1.msra.mxu0 0.0
    %487 = vmatprep.subr.mxu0 0.0
    %488 = vmatpush1.msra.mxu0 0.0
    %489 = vmatprep.subr.mxu0 0.0
    %490 = vmatpush1.msra.mxu0 0.0
    %491 = vmatprep.subr.mxu0 0.0
    %492 = vmatpush1.msra.mxu0 0.0
    %493 = vmatprep.subr.mxu0 0.0
    %494 = vmatpush1.msra.mxu0 0.0
    %495 = vmatprep.subr.mxu0 0.0
    %496 = vmatpush1.msra.mxu0 0.0
    %497 = vmatprep.subr.mxu0 0.0
    %498 = vmatpush1.msra.mxu0 0.0
    %499 = vmatprep.mubr.f32.mxu0 0.0
    %500 = vmatmul.mubr.f32.gmra.mrb[0].mxu0 %v433
    %v501 = vpop.f32.mrb[0].mxu0
    %v502 = vadd.f32 0.0, %v501
    %v503 = vpop.f32.mrb[0].mxu0
    %504 = vdwg.mxu0
    %v505 = vadd.f32 %v431, %v502
    %v506 = vsel %vm65, %v505, -inf
    %507 = vmax.xlane.f32.xlu0 %v506
    %v508 = vpop.xlane.xlu0 %507
    %v509 = vsub.f32 %v506, %v508
    %v510 = vmul.f32 %v509, 1.442695
    %v511 = vpow.pop %v510
    %512 = vadd.xlane.f32.xlu0 %v511
    %v513 = vpop.xlane.xlu0 %512
    %v514 = vlog2.pop %v513
    %v515 = vmul.f32 %v514, 0.6931472
    %v516 = vsub.f32 %v509, %v515
    %v517 = vsel %vm65, %v516, %v505
    %s518 = scalar_lea.vmem [#allocation9], 32
    %519 = vst [vmem:[%s518] sm:$0xff] %v517
    %s520 = scalar_lea.vmem [#allocation3], 40
    %v521 = vld [vmem:[%s520] sm:$0xff]
    %v523 = vsel %vm72, %v505, 0
    %525 = vmatprep.subr.mxu0 0.0
    %526 = vmatpush1.msra.mxu0 %v66
    %527 = vmatprep.subr.mxu0 0.0
    %528 = vmatpush1.msra.mxu0 %v67
    %529 = vmatprep.subr.mxu0 0.0
    %530 = vmatpush1.msra.mxu0 %v68
    %531 = vmatprep.subr.mxu0 0.0
    %532 = vmatpush1.msra.mxu0 %v69
    %533 = vmatprep.subr.mxu0 0.0
    %534 = vmatpush1.msra.mxu0 0.0
    %535 = vmatprep.subr.mxu0 0.0
    %536 = vmatpush1.msra.mxu0 0.0
    %537 = vmatprep.subr.mxu0 0.0
    %538 = vmatpush1.msra.mxu0 0.0
    %539 = vmatprep.subr.mxu0 0.0
    %540 = vmatpush1.msra.mxu0 0.0
    %541 = vmatprep.subr.mxu0 0.0
    %542 = vmatpush1.msra.mxu0 0.0
    %543 = vmatprep.subr.mxu0 0.0
    %544 = vmatpush1.msra.mxu0 0.0
    %545 = vmatprep.subr.mxu0 0.0
    %546 = vmatpush1.msra.mxu0 0.0
    %547 = vmatprep.subr.mxu0 0.0
    %548 = vmatpush1.msra.mxu0 0.0
    %549 = vmatprep.subr.mxu0 0.0
    %550 = vmatpush1.msra.mxu0 0.0
    %551 = vmatprep.subr.mxu0 0.0
    %552 = vmatpush1.msra.mxu0 0.0
    %553 = vmatprep.subr.mxu0 0.0
    %554 = vmatpush1.msra.mxu0 0.0
    %555 = vmatprep.subr.mxu0 0.0
    %556 = vmatpush1.msra.mxu0 0.0
    %557 = vmatprep.subr.mxu0 0.0
    %558 = vmatpush1.msra.mxu0 0.0
    %559 = vmatprep.subr.mxu0 0.0
    %560 = vmatpush1.msra.mxu0 0.0
    %561 = vmatprep.subr.mxu0 0.0
    %562 = vmatpush1.msra.mxu0 0.0
    %563 = vmatprep.subr.mxu0 0.0
    %564 = vmatpush1.msra.mxu0 0.0
    %565 = vmatprep.subr.mxu0 0.0
    %566 = vmatpush1.msra.mxu0 0.0
    %567 = vmatprep.subr.mxu0 0.0
    %568 = vmatpush1.msra.mxu0 0.0
    %569 = vmatprep.subr.mxu0 0.0
    %570 = vmatpush1.msra.mxu0 0.0
    %571 = vmatprep.subr.mxu0 0.0
    %572 = vmatpush1.msra.mxu0 0.0
    %573 = vmatprep.subr.mxu0 0.0
    %574 = vmatpush1.msra.mxu0 0.0
    %575 = vmatprep.subr.mxu0 0.0
    %576 = vmatpush1.msra.mxu0 0.0
    %577 = vmatprep.subr.mxu0 0.0
    %578 = vmatpush1.msra.mxu0 0.0
    %579 = vmatprep.subr.mxu0 0.0
    %580 = vmatpush1.msra.mxu0 0.0
    %581 = vmatprep.subr.mxu0 0.0
    %582 = vmatpush1.msra.mxu0 0.0
    %583 = vmatprep.subr.mxu0 0.0
    %584 = vmatpush1.msra.mxu0 0.0
    %585 = vmatprep.subr.mxu0 0.0
    %586 = vmatpush1.msra.mxu0 0.0
    %587 = vmatprep.subr.mxu0 0.0
    %588 = vmatpush1.msra.mxu0 0.0
    %589 = vmatprep.mubr.f32.mxu0 0.0
    %590 = vmatmul.mubr.f32.gmra.mrb[0].mxu0 %v523
    %v591 = vpop.f32.mrb[0].mxu0
    %v592 = vadd.f32 0.0, %v591
    %v593 = vpop.f32.mrb[0].mxu0
    %594 = vdwg.mxu0
    %v595 = vadd.f32 %v521, %v592
    %v596 = vsel %vm65, %v595, -inf
    %597 = vmax.xlane.f32.xlu0 %v596
    %v598 = vpop.xlane.xlu0 %597
    %v599 = vsub.f32 %v596, %v598
    %v600 = vmul.f32 %v599, 1.442695
    %v601 = vpow.pop %v600
    %602 = vadd.xlane.f32.xlu0 %v601
    %v603 = vpop.xlane.xlu0 %602
    %v604 = vlog2.pop %v603
    %v605 = vmul.f32 %v604, 0.6931472
    %v606 = vsub.f32 %v599, %v605
    %v607 = vsel %vm65, %v606, %v595
    %s608 = scalar_lea.vmem [#allocation9], 40
    %609 = vst [vmem:[%s608] sm:$0xff] %v607
    %s610 = scalar_lea.vmem [#allocation3], 48
    %v611 = vld [vmem:[%s610] sm:$0xff]
    %v613 = vsel %vm72, %v595, 0
    %615 = vmatprep.subr.mxu0 0.0
    %616 = vmatpush1.msra.mxu0 %v66
    %617 = vmatprep.subr.mxu0 0.0
    %618 = vmatpush1.msra.mxu0 %v67
    %619 = vmatprep.subr.mxu0 0.0
    %620 = vmatpush1.msra.mxu0 %v68
    %621 = vmatprep.subr.mxu0 0.0
    %622 = vmatpush1.msra.mxu0 %v69
    %623 = vmatprep.subr.mxu0 0.0
    %624 = vmatpush1.msra.mxu0 0.0
    %625 = vmatprep.subr.mxu0 0.0
    %626 = vmatpush1.msra.mxu0 0.0
    %627 = vmatprep.subr.mxu0 0.0
    %628 = vmatpush1.msra.mxu0 0.0
    %629 = vmatprep.subr.mxu0 0.0
    %630 = vmatpush1.msra.mxu0 0.0
    %631 = vmatprep.subr.mxu0 0.0
    %632 = vmatpush1.msra.mxu0 0.0
    %633 = vmatprep.subr.mxu0 0.0
    %634 = vmatpush1.msra.mxu0 0.0
    %635 = vmatprep.subr.mxu0 0.0
    %636 = vmatpush1.msra.mxu0 0.0
    %637 = vmatprep.subr.mxu0 0.0
    %638 = vmatpush1.msra.mxu0 0.0
    %639 = vmatprep.subr.mxu0 0.0
    %640 = vmatpush1.msra.mxu0 0.0
    %641 = vmatprep.subr.mxu0 0.0
    %642 = vmatpush1.msra.mxu0 0.0
    %643 = vmatprep.subr.mxu0 0.0
    %644 = vmatpush1.msra.mxu0 0.0
    %645 = vmatprep.subr.mxu0 0.0
    %646 = vmatpush1.msra.mxu0 0.0
    %647 = vmatprep.subr.mxu0 0.0
    %648 = vmatpush1.msra.mxu0 0.0
    %649 = vmatprep.subr.mxu0 0.0
    %650 = vmatpush1.msra.mxu0 0.0
    %651 = vmatprep.subr.mxu0 0.0
    %652 = vmatpush1.msra.mxu0 0.0
    %653 = vmatprep.subr.mxu0 0.0
    %654 = vmatpush1.msra.mxu0 0.0
    %655 = vmatprep.subr.mxu0 0.0
    %656 = vmatpush1.msra.mxu0 0.0
    %657 = vmatprep.subr.mxu0 0.0
    %658 = vmatpush1.msra.mxu0 0.0
    %659 = vmatprep.subr.mxu0 0.0
    %660 = vmatpush1.msra.mxu0 0.0
    %661 = vmatprep.subr.mxu0 0.0
    %662 = vmatpush1.msra.mxu0 0.0
    %663 = vmatprep.subr.mxu0 0.0
    %664 = vmatpush1.msra.mxu0 0.0
    %665 = vmatprep.subr.mxu0 0.0
    %666 = vmatpush1.msra.mxu0 0.0
    %667 = vmatprep.subr.mxu0 0.0
    %668 = vmatpush1.msra.mxu0 0.0
    %669 = vmatprep.subr.mxu0 0.0
    %670 = vmatpush1.msra.mxu0 0.0
    %671 = vmatprep.subr.mxu0 0.0
    %672 = vmatpush1.msra.mxu0 0.0
    %673 = vmatprep.subr.mxu0 0.0
    %674 = vmatpush1.msra.mxu0 0.0
    %675 = vmatprep.subr.mxu0 0.0
    %676 = vmatpush1.msra.mxu0 0.0
    %677 = vmatprep.subr.mxu0 0.0
    %678 = vmatpush1.msra.mxu0 0.0
    %679 = vmatprep.mubr.f32.mxu0 0.0
    %680 = vmatmul.mubr.f32.gmra.mrb[0].mxu0 %v613
    %v681 = vpop.f32.mrb[0].mxu0
    %v682 = vadd.f32 0.0, %v681
    %v683 = vpop.f32.mrb[0].mxu0
    %684 = vdwg.mxu0
    %v685 = vadd.f32 %v611, %v682
    %v686 = vsel %vm65, %v685, -inf
    %687 = vmax.xlane.f32.xlu0 %v686
    %v688 = vpop.xlane.xlu0 %687
    %v689 = vsub.f32 %v686, %v688
    %v690 = vmul.f32 %v689, 1.442695
    %v691 = vpow.pop %v690
    %692 = vadd.xlane.f32.xlu0 %v691
    %v693 = vpop.xlane.xlu0 %692
    %v694 = vlog2.pop %v693
    %v695 = vmul.f32 %v694, 0.6931472
    %v696 = vsub.f32 %v689, %v695
    %v697 = vsel %vm65, %v696, %v685
    %s698 = scalar_lea.vmem [#allocation9], 48
    %699 = vst [vmem:[%s698] sm:$0xff] %v697
    %s700 = scalar_lea.vmem [#allocation3], 56
    %v701 = vld [vmem:[%s700] sm:$0xff]
    %v703 = vsel %vm72, %v685, 0
    %705 = vmatprep.subr.mxu0 0.0
    %706 = vmatpush1.msra.mxu0 %v66
    %707 = vmatprep.subr.mxu0 0.0
    %708 = vmatpush1.msra.mxu0 %v67
    %709 = vmatprep.subr.mxu0 0.0
    %710 = vmatpush1.msra.mxu0 %v68
    %711 = vmatprep.subr.mxu0 0.0
    %712 = vmatpush1.msra.mxu0 %v69
    %713 = vmatprep.subr.mxu0 0.0
    %714 = vmatpush1.msra.mxu0 0.0
    %715 = vmatprep.subr.mxu0 0.0
    %716 = vmatpush1.msra.mxu0 0.0
    %717 = vmatprep.subr.mxu0 0.0
    %718 = vmatpush1.msra.mxu0 0.0
    %719 = vmatprep.subr.mxu0 0.0
    %720 = vmatpush1.msra.mxu0 0.0
    %721 = vmatprep.subr.mxu0 0.0
    %722 = vmatpush1.msra.mxu0 0.0
    %723 = vmatprep.subr.mxu0 0.0
    %724 = vmatpush1.msra.mxu0 0.0
    %725 = vmatprep.subr.mxu0 0.0
    %726 = vmatpush1.msra.mxu0 0.0
    %727 = vmatprep.subr.mxu0 0.0
    %728 = vmatpush1.msra.mxu0 0.0
    %729 = vmatprep.subr.mxu0 0.0
    %730 = vmatpush1.msra.mxu0 0.0
    %731 = vmatprep.subr.mxu0 0.0
    %732 = vmatpush1.msra.mxu0 0.0
    %733 = vmatprep.subr.mxu0 0.0
    %734 = vmatpush1.msra.mxu0 0.0
    %735 = vmatprep.subr.mxu0 0.0
    %736 = vmatpush1.msra.mxu0 0.0
    %737 = vmatprep.subr.mxu0 0.0
    %738 = vmatpush1.msra.mxu0 0.0
    %739 = vmatprep.subr.mxu0 0.0
    %740 = vmatpush1.msra.mxu0 0.0
    %741 = vmatprep.subr.mxu0 0.0
    %742 = vmatpush1.msra.mxu0 0.0
    %743 = vmatprep.subr.mxu0 0.0
    %744 = vmatpush1.msra.mxu0 0.0
    %745 = vmatprep.subr.mxu0 0.0
    %746 = vmatpush1.msra.mxu0 0.0
    %747 = vmatprep.subr.mxu0 0.0
    %748 = vmatpush1.msra.mxu0 0.0
    %749 = vmatprep.subr.mxu0 0.0
    %750 = vmatpush1.msra.mxu0 0.0
    %751 = vmatprep.subr.mxu0 0.0
    %752 = vmatpush1.msra.mxu0 0.0
    %753 = vmatprep.subr.mxu0 0.0
    %754 = vmatpush1.msra.mxu0 0.0
    %755 = vmatprep.subr.mxu0 0.0
    %756 = vmatpush1.msra.mxu0 0.0
    %757 = vmatprep.subr.mxu0 0.0
    %758 = vmatpush1.msra.mxu0 0.0
    %759 = vmatprep.subr.mxu0 0.0
    %760 = vmatpush1.msra.mxu0 0.0
    %761 = vmatprep.subr.mxu0 0.0
    %762 = vmatpush1.msra.mxu0 0.0
    %763 = vmatprep.subr.mxu0 0.0
    %764 = vmatpush1.msra.mxu0 0.0
    %765 = vmatprep.subr.mxu0 0.0
    %766 = vmatpush1.msra.mxu0 0.0
    %767 = vmatprep.subr.mxu0 0.0
    %768 = vmatpush1.msra.mxu0 0.0
    %769 = vmatprep.mubr.f32.mxu0 0.0
    %770 = vmatmul.mubr.f32.gmra.mrb[0].mxu0 %v703
    %v771 = vpop.f32.mrb[0].mxu0
    %v772 = vadd.f32 0.0, %v771
    %v773 = vpop.f32.mrb[0].mxu0
    %774 = vdwg.mxu0
    %v775 = vadd.f32 %v701, %v772
    %v776 = vsel %vm65, %v775, -inf
    %777 = vmax.xlane.f32.xlu0 %v776
    %v778 = vpop.xlane.xlu0 %777
    %v779 = vsub.f32 %v776, %v778
    %v780 = vmul.f32 %v779, 1.442695
    %v781 = vpow.pop %v780
    %782 = vadd.xlane.f32.xlu0 %v781
    %v783 = vpop.xlane.xlu0 %782
    %v784 = vlog2.pop %v783
    %v785 = vmul.f32 %v784, 0.6931472
    %v786 = vsub.f32 %v779, %v785
    %v787 = vsel %vm65, %v786, %v775
    %s788 = scalar_lea.vmem [#allocation9], 56
    %789 = vst [vmem:[%s788] sm:$0xff] %v787
    %790 = vst.msk [vmem:[#allocation2] sm:$0xff] %vm72, %v775
    // Predicated region
    $region30: #{tpu_custom_call.1} parent=1 // pred_check
      _
    $region31: #{tpu_custom_call.1} parent=1 // pred_check_branch
      %792 = sbr.rel (0) target = $region33
    $region32: #{tpu_custom_call.1} parent=1 // pred_region
      %s794 = ssub.s32 1024, 1024
      %795 = vsyncadd [#allocation5], %s794
      %s796 = sshll.u32 [#allocation9], 4
      %s797 = int_to_ptr.vmem [resolvable:$true] %s796
      %802 = dma.vmem_to_hbm [thread:$0]  %s797, 1024, %s3, [#allocation5], 128, 128, 8
    $region33: #{tpu_custom_call.1} parent=1 // pred_fallthru
      _
    // Predicated region
    $region34: #{tpu_custom_call.1} parent=1 // pred_check
      _
    $region35: #{tpu_custom_call.1} parent=1 // pred_check_branch
      %804 = sbr.rel (0) target = $region37
    $region36: #{tpu_custom_call.1} parent=1 // pred_region
      %805 = dma.done [#allocation5], 1024
    $region37: #{tpu_custom_call.1} parent=1 // pred_fallthru
      _
    %806 = vsyncpa [#allocation4], 1
    %807 = vsyncpa [#allocation7], 1
    %808 = vsyncpa [#allocation5], 1

</llo_original>
